<compile_context>
chip_gen: v6e
topology: v6e:2x2x1
jax: 0.10.0
libtpu: 0.0.40
codegen_flags: <defaults>
</compile_context>

<pallas_src>
import math
import jax
import jax.numpy as jnp
from jax.experimental import pallas as pl
from jax.experimental.pallas import tpu as pltpu


def _gcn_kernel(x_ref, w_ref, b_ref, o_ref):
    # x_ref: (Bt, N, C)  node-major slab, lane-dense (channels last)
    # w_ref: (C, F)      GCN weight
    # b_ref: (1, F)      GCN bias
    # o_ref: (Bt, N, F)  output, node-major / lane-dense (features last)
    x = x_ref[...]                                            # (Bt, N, C) f32
    w = w_ref[...]                                            # (C, F)
    b = b_ref[...]                                            # (1, F)
    Bt, N, C = x_ref.shape
    Fo = w_ref.shape[1]

    # --- self_similarity: cosine similarity + row softmax (batched) ---
    sq = jnp.sum(x * x, axis=-1, keepdims=True)               # (Bt, N, 1)
    # F.normalize semantics: x / max(||x||_2, 1e-12)
    xn = x / jnp.maximum(jnp.sqrt(sq), 1e-12)                 # (Bt, N, C)
    sim = jnp.einsum("bnc,bmc->bnm", xn, xn,
                     preferred_element_type=jnp.float32)      # (Bt, N, N)
    # Cosine similarity is bounded by 1 -> exp cannot overflow; no max-subtract.
    e = jnp.exp(sim)
    adj = e / jnp.sum(e, axis=-1, keepdims=True)              # exact row softmax

    # --- support = x @ W, one MXU push for the whole slab ---
    support = jnp.dot(x.reshape(Bt * N, C), w,
                      preferred_element_type=jnp.float32)     # (Bt*N, F)
    support = support.reshape(Bt, N, Fo)

    # --- out = adj @ support + bias + x (residual requires F == C) ---
    out = jnp.einsum("bnm,bmf->bnf", adj, support,
                     preferred_element_type=jnp.float32)      # (Bt, N, F)
    out = out + b + x
    o_ref[...] = out.astype(o_ref.dtype)


def graph_convolution(x, weight, bias, *, batch_tile=None):
    """x: (B, C, N) float32 -> (B, F, N) float32 (F == out_features == C)."""
    B, C, N = x.shape
    Ci, Fo = weight.shape
    assert Ci == C, f"weight in_features {Ci} != input channels {C}"
    # The module's residual `output + bias + input` requires F == C.
    assert Fo == C, "GraphConvolution residual requires out_features == in_features"

    if batch_tile is None:
        # Single grid step: v5e/v6e have one TensorCore, and at these shapes the
        # per-step pipeline overhead dominates any split.  On v7x with large
        # n_class, pass batch_tile=B//2 to feed both TensorCores.
        batch_tile = B
    assert B % batch_tile == 0, "batch_tile must divide B"
    grid = (B // batch_tile,)

    # Tiny (~KB) layout passes in the wrapper so the kernel sees a node-major,
    # lane-dense slab and writes a lane-dense output (no in-kernel transposes,
    # no masked 8-lane stores).  XLA fuses the output transpose downstream.
    x_nm = jnp.transpose(x, (0, 2, 1))                        # (B, N, C)
    b2 = bias.reshape(1, Fo)

    out_nf = pl.pallas_call(
        _gcn_kernel,
        out_shape=jax.ShapeDtypeStruct((B, N, Fo), x.dtype),
        grid=grid,
        in_specs=[
            pl.BlockSpec((batch_tile, N, C), lambda b: (b, 0, 0)),
            pl.BlockSpec((C, Fo), lambda b: (0, 0)),
            pl.BlockSpec((1, Fo), lambda b: (0, 0)),
        ],
        out_specs=pl.BlockSpec((batch_tile, N, Fo), lambda b: (b, 0, 0)),
        compiler_params=pltpu.CompilerParams(
            dimension_semantics=("parallel",)),
    )(x_nm, weight, b2)

    return jnp.transpose(out_nf, (0, 2, 1))                   # (B, F, N)


def _reference(x, weight, bias):
    # Pure-JAX reference mirroring the PyTorch forward exactly.
    xp = jnp.transpose(x, (0, 2, 1))                          # (B, N, C)
    n = xp / jnp.maximum(jnp.linalg.norm(xp, axis=-1, keepdims=True), 1e-12)
    sim = jnp.einsum("bnc,bmc->bnm", n, n)
    adj = jax.nn.softmax(sim, axis=-1)
    support = jnp.einsum("bnc,cf->bnf", xp, weight)
    out = jnp.einsum("bnm,bmf->bnf", adj, support) + bias + xp
    return jnp.transpose(out, (0, 2, 1))


if __name__ == "__main__":
    # Module config: in_features == out_features (required by the `+ input` residual).
    in_features = 32
    out_features = 32
    B, N = 2, 8                                     # batch, n_class (graph nodes)

    key = jax.random.PRNGKey(0)
    kx, kw, kb = jax.random.split(key, 3)

    stdv = 1.0 / math.sqrt(out_features)
    weight = jax.random.uniform(kw, (in_features, out_features),
                                minval=-stdv, maxval=stdv, dtype=jnp.float32)
    bias = jax.random.uniform(kb, (out_features,),
                              minval=-stdv, maxval=stdv, dtype=jnp.float32)

    x = jax.random.normal(kx, (B, in_features, N), dtype=jnp.float32)

    y = jax.block_until_ready(graph_convolution(x, weight, bias))
    y_ref = _reference(x, weight, bias)

    assert y.shape == (B, out_features, N)
    assert jnp.allclose(y, y_ref, rtol=1e-4, atol=1e-4), "mismatch vs reference"

    print("KERNEL_OK")
</pallas_src>

<mosaic_0001>
module attributes {stable_mosaic.version = 11 : i64} {
  func.func @_gcn_kernel(%arg0: i32, %arg1: memref<2x8x32xf32, #tpu.memory_space<vmem>>, %arg2: memref<32x32xf32, #tpu.memory_space<vmem>>, %arg3: memref<1x32xf32, #tpu.memory_space<vmem>>, %arg4: memref<2x8x32xf32, #tpu.memory_space<vmem>>) attributes {dimension_semantics = [#tpu.dimension_semantics<parallel>], iteration_bounds = array<i64: 1>, scalar_prefetch = 0 : i64, scratch_operands = 0 : i64, tpu.core_type = #tpu.core_type<tc>, window_params = [{transform_indices = @transform_0, window_bounds = array<i64: 2, 8, 32>}, {pipeline_mode = #tpu.pipeline_mode<synchronous>, transform_indices = @transform_1, window_bounds = array<i64: 32, 32>}, {pipeline_mode = #tpu.pipeline_mode<synchronous>, transform_indices = @transform_2, window_bounds = array<i64: 1, 32>}, {transform_indices = @transform_3, window_bounds = array<i64: 2, 8, 32>}]} {
    %c0 = arith.constant 0 : index
    %c0_0 = arith.constant 0 : index
    %c0_1 = arith.constant 0 : index
    %0 = vector.load %arg1[%c0, %c0_0, %c0_1] : memref<2x8x32xf32, #tpu.memory_space<vmem>>, vector<2x8x32xf32>
    %c0_2 = arith.constant 0 : index
    %c0_3 = arith.constant 0 : index
    %1 = vector.load %arg2[%c0_2, %c0_3] : memref<32x32xf32, #tpu.memory_space<vmem>>, vector<32x32xf32>
    %c0_4 = arith.constant 0 : index
    %c0_5 = arith.constant 0 : index
    %2 = vector.load %arg3[%c0_4, %c0_5] : memref<1x32xf32, #tpu.memory_space<vmem>>, vector<1x32xf32>
    %3 = arith.mulf %0, %0 : vector<2x8x32xf32>
    %cst = arith.constant dense<0.000000e+00> : vector<2x8xf32>
    %4 = vector.multi_reduction <add>, %3, %cst [2] : vector<2x8x32xf32> to vector<2x8xf32>
    %5 = vector.shape_cast %4 : vector<2x8xf32> to vector<2x8x1xf32>
    %6 = math.sqrt %5 : vector<2x8x1xf32>
    %cst_6 = arith.constant 9.99999996E-13 : f32
    %7 = vector.broadcast %cst_6 : f32 to vector<2x8x1xf32>
    %8 = arith.maximumf %6, %7 : vector<2x8x1xf32>
    %9 = vector.broadcast %8 : vector<2x8x1xf32> to vector<2x8x32xf32>
    %10 = arith.divf %0, %9 : vector<2x8x32xf32>
    "tpu.trace_start"() <{level = 10 : i32, message = "bnc,bmc->bnm"}> : () -> ()
    %cst_7 = arith.constant dense<0.000000e+00> : vector<2x8x8xf32>
    %11 = tpu.matmul %10, %10, %cst_7 {dimension_numbers = #tpu.dot_dimension_numbers<[2], [2], [1], [1], [0, 0, 0, 1, 1, 1], [0], [0]>} : vector<2x8x32xf32>, vector<2x8x32xf32>, vector<2x8x8xf32> -> vector<2x8x8xf32>
    "tpu.trace_stop"() : () -> ()
    %12 = math.exp %11 : vector<2x8x8xf32>
    %cst_8 = arith.constant dense<0.000000e+00> : vector<2x8xf32>
    %13 = vector.multi_reduction <add>, %12, %cst_8 [2] : vector<2x8x8xf32> to vector<2x8xf32>
    %14 = vector.shape_cast %13 : vector<2x8xf32> to vector<2x8x1xf32>
    %15 = vector.broadcast %14 : vector<2x8x1xf32> to vector<2x8x8xf32>
    %16 = arith.divf %12, %15 : vector<2x8x8xf32>
    %17 = vector.shape_cast %0 : vector<2x8x32xf32> to vector<16x32xf32>
    %cst_9 = arith.constant dense<0.000000e+00> : vector<16x32xf32>
    %18 = tpu.matmul %17, %1, %cst_9 {dimension_numbers = #tpu.dot_dimension_numbers<[1], [0], [0], [1], [0, 0, 1, 1], [], []>} : vector<16x32xf32>, vector<32x32xf32>, vector<16x32xf32> -> vector<16x32xf32>
    %19 = vector.shape_cast %18 : vector<16x32xf32> to vector<2x8x32xf32>
    "tpu.trace_start"() <{level = 10 : i32, message = "bnm,bmf->bnf"}> : () -> ()
    %cst_10 = arith.constant dense<0.000000e+00> : vector<2x8x32xf32>
    %20 = tpu.matmul %16, %19, %cst_10 {dimension_numbers = #tpu.dot_dimension_numbers<[2], [1], [1], [2], [0, 0, 0, 1, 1, 2], [0], [0]>} : vector<2x8x8xf32>, vector<2x8x32xf32>, vector<2x8x32xf32> -> vector<2x8x32xf32>
    "tpu.trace_stop"() : () -> ()
    %21 = vector.shape_cast %2 : vector<1x32xf32> to vector<1x1x32xf32>
    %22 = vector.broadcast %21 : vector<1x1x32xf32> to vector<2x8x32xf32>
    %23 = arith.addf %20, %22 : vector<2x8x32xf32>
    %24 = arith.addf %23, %0 : vector<2x8x32xf32>
    %c0_11 = arith.constant 0 : index
    %c0_12 = arith.constant 0 : index
    %c0_13 = arith.constant 0 : index
    %25 = vector.load %arg4[%c0_11, %c0_12, %c0_13] : memref<2x8x32xf32, #tpu.memory_space<vmem>>, vector<2x8x32xf32>
    tpu.vector_store %arg4[%c0_11, %c0_12, %c0_13], %24 {strides = array<i32>} : memref<2x8x32xf32, #tpu.memory_space<vmem>>, vector<2x8x32xf32>,
    return
  }
  func.func @transform_0(%arg0: i32) -> (i32, i32, i32) {
    %c0_i32 = arith.constant 0 : i32
    %c0_i32_0 = arith.constant 0 : i32
    %c0_i32_1 = arith.constant 0 : i32
    return %arg0, %c0_i32, %c0_i32_0 : i32, i32, i32
  }
  func.func @transform_1(%arg0: i32) -> (i32, i32) {
    %c0_i32 = arith.constant 0 : i32
    %c0_i32_0 = arith.constant 0 : i32
    %c0_i32_1 = arith.constant 0 : i32
    return %c0_i32, %c0_i32_0 : i32, i32
  }
  func.func @transform_2(%arg0: i32) -> (i32, i32) {
    %c0_i32 = arith.constant 0 : i32
    %c0_i32_0 = arith.constant 0 : i32
    %c0_i32_1 = arith.constant 0 : i32
    return %c0_i32, %c0_i32_0 : i32, i32
  }
  func.func @transform_3(%arg0: i32) -> (i32, i32, i32) {
    %c0_i32 = arith.constant 0 : i32
    %c0_i32_0 = arith.constant 0 : i32
    %c0_i32_1 = arith.constant 0 : i32
    return %arg0, %c0_i32, %c0_i32_0 : i32, i32, i32
  }
}

</mosaic_0001>

<llo_original>
// kernel: tpu_custom_call.1
$region0: #{tpu_custom_call.1}
  #allocation0 [shape = 'u32[]', space=smem, size = 0x4, offset = 0x4, fixed_abs, tag = 'smem constant byte address 0x4 - core index']
  #allocation1 [shape = 'u32[144,128]{1,0:T(1,128)}', space=vmem, size = 0x12000, scoped, tag = 'internal scratch']
  %s0 = inlined_call_operand.hbm [shape: f32[2,8,32], index: 0, kind: input, shape index: {}]
  %s1 = inlined_call_operand.hbm [shape: f32[32,32], index: 1, kind: input, shape index: {}]
  %s2 = inlined_call_operand.vmem [shape: f32[1,32], index: 2, kind: input, shape index: {}]
  %s3 = inlined_call_operand.hbm [shape: f32[2,8,32], index: 3, kind: output, shape index: {}]
  %s4 = sld [smem:[#allocation0]]
  $region30: #{tpu_custom_call.1} parent=0
    _
  %s6 = ssub.s32 1, %s4
  %s7 = scalar_select 0, %s6, %s4
  $region1: #{tpu_custom_call.1} parent=0
    #allocation2 [shape = 'u8[8192]{0}', space=vmem, size = 0x2000, scoped, tag = 'input window, operand 0, single buffered']
    #allocation3 [shape = 's32[1]{0}', space=sflag, size = 0x4, scoped, tag = 'scoped memory for tpu_custom_call.1']
    #allocation4 [shape = 's32[1]{0}', space=sflag, size = 0x4, scoped, tag = 'scoped memory for tpu_custom_call.1']
    #allocation5 [shape = 'u8[16384]{0}', space=vmem, size = 0x4000, scoped, tag = 'input window, operand 1, single buffered']
    #allocation6 [shape = 's32[1]{0}', space=sflag, size = 0x4, scoped, tag = 'scoped memory for tpu_custom_call.1']
    #allocation7 [shape = 'u8[8192]{0}', space=vmem, size = 0x2000, scoped, tag = 'output window, operand 0, single buffered']
    %8 = vsyncpa [#allocation3], 0
    %9 = vsyncpa [#allocation6], 0
    %10 = vsyncpa [#allocation4], 0
    // Predicated region
    $region2: #{tpu_custom_call.1} parent=1 // pred_check
      _
    $region3: #{tpu_custom_call.1} parent=1 // pred_check_branch
      %12 = sbr.rel (0) target = $region5
    $region4: #{tpu_custom_call.1} parent=1 // pred_region
      %s14 = ssub.s32 256, 256
      %15 = vsyncadd [#allocation3], %s14
      %s16 = sshll.u32 [#allocation2], 4
      %s17 = int_to_ptr.vmem [resolvable:$true] %s16
      %22 = dma.hbm_to_vmem [thread:$0]  %s0, 256, %s17, [#allocation3], 128, 128, 8
    $region5: #{tpu_custom_call.1} parent=1 // pred_fallthru
      _
    // Predicated region
    $region6: #{tpu_custom_call.1} parent=1 // pred_check
      _
    $region7: #{tpu_custom_call.1} parent=1 // pred_check_branch
      %24 = sbr.rel (0) target = $region9
    $region8: #{tpu_custom_call.1} parent=1 // pred_region
      %s26 = ssub.s32 512, 512
      %27 = vsyncadd [#allocation6], %s26
      %s28 = sshll.u32 [#allocation5], 4
      %s29 = int_to_ptr.vmem [resolvable:$true] %s28
      %34 = dma.hbm_to_vmem [thread:$0]  %s1, 512, %s29, [#allocation6], 128, 128, 8
    $region9: #{tpu_custom_call.1} parent=1 // pred_fallthru
      _
    // Predicated region
    $region10: #{tpu_custom_call.1} parent=1 // pred_check
      _
    $region11: #{tpu_custom_call.1} parent=1 // pred_check_branch
      %36 = sbr.rel (0) target = $region13
    $region12: #{tpu_custom_call.1} parent=1 // pred_region
      _
    $region13: #{tpu_custom_call.1} parent=1 // pred_fallthru
      _
    // Predicated region
    $region14: #{tpu_custom_call.1} parent=1 // pred_check
      _
    $region15: #{tpu_custom_call.1} parent=1 // pred_check_branch
      %38 = sbr.rel (0) target = $region17
    $region16: #{tpu_custom_call.1} parent=1 // pred_region
      %39 = dma.done [#allocation3], 256
    $region17: #{tpu_custom_call.1} parent=1 // pred_fallthru
      _
    // Predicated region
    $region18: #{tpu_custom_call.1} parent=1 // pred_check
      _
    $region19: #{tpu_custom_call.1} parent=1 // pred_check_branch
      %41 = sbr.rel (0) target = $region21
    $region20: #{tpu_custom_call.1} parent=1 // pred_region
      %42 = dma.done [#allocation6], 512
    $region21: #{tpu_custom_call.1} parent=1 // pred_fallthru
      _
    %v43 = vld [vmem:[#allocation2] sm:$0xff]
    %v44 = vld [vmem:[#allocation2 + $0x8] sm:$0xff]
    %v45 = vld [vmem:[#allocation5] sm:$0xff]
    %v46 = vld [vmem:[#allocation5 + $0x8] sm:$0xff]
    %v47 = vld [vmem:[#allocation5 + $0x10] sm:$0xff]
    %v48 = vld [vmem:[#allocation5 + $0x18] sm:$0xff]
    %v49 = vld [vmem:[%s2] sm:$0x1]
    %v50 = vmul.f32 %v43, %v43
    %v51 = vmul.f32 %v44, %v44
    %vm52 = vcmask 261120
    %v53 = vsel %vm52, %v50, 0.0
    %54 = vadd.xlane.f32.xlu0 %v53
    %v55 = vpop.xlane.xlu0 %54
    %v56 = vsel %vm52, %v51, 0.0
    %57 = vadd.xlane.f32.xlu0 %v56
    %v58 = vpop.xlane.xlu0 %57
    %v59 = vrsqrt.pop %v55
    %v60 = vmul.f32 %v55, %v59
    %vm61 = vcmp.eq.f32.partialorder %v55, inf
    %v62 = vsel %vm61, %v55, %v60
    %vm63 = vcmp.eq.f32.partialorder %v55, 0.0
    %v64 = vand.u32 %v55, 2147483648
    %v65 = vsel %vm63, %v64, %v62
    %v66 = vrsqrt.pop %v58
    %v67 = vmul.f32 %v58, %v66
    %vm68 = vcmp.eq.f32.partialorder %v58, inf
    %v69 = vsel %vm68, %v58, %v67
    %vm70 = vcmp.eq.f32.partialorder %v58, 0.0
    %v71 = vand.u32 %v58, 2147483648
    %v72 = vsel %vm70, %v71, %v69
    %v73 = vmax.f32 %v65, 1e-12
    %v74 = vmax.f32 %v72, 1e-12
    %v75 = vrcp.pop %v73
    %v76 = vmul.f32 %v43, %v75
    %v77 = vrcp.pop %v74
    %v78 = vmul.f32 %v44, %v77
    %v80 = vsel %vm52, %v76, 0
    %82 = vmatprep.subr.mxu0 0.0
    %83 = vmatpush1.xpose.msra.mxu0 0.0
    %84 = vmatprep.subr.mxu0 0.0
    %85 = vmatpush1.xpose.msra.mxu0 0.0
    %86 = vmatprep.subr.mxu0 0.0
    %87 = vmatpush1.xpose.msra.mxu0 0.0
    %88 = vmatprep.subr.mxu0 0.0
    %89 = vmatpush1.xpose.msra.mxu0 0.0
    %90 = vmatprep.subr.mxu0 0.0
    %91 = vmatpush1.xpose.msra.mxu0 0.0
    %92 = vmatprep.subr.mxu0 0.0
    %93 = vmatpush1.xpose.msra.mxu0 0.0
    %94 = vmatprep.subr.mxu0 0.0
    %95 = vmatpush1.xpose.msra.mxu0 0.0
    %96 = vmatprep.subr.mxu0 0.0
    %97 = vmatpush1.xpose.msra.mxu0 0.0
    %98 = vmatprep.subr.mxu0 0.0
    %99 = vmatpush1.xpose.msra.mxu0 0.0
    %100 = vmatprep.subr.mxu0 0.0
    %101 = vmatpush1.xpose.msra.mxu0 0.0
    %102 = vmatprep.subr.mxu0 0.0
    %103 = vmatpush1.xpose.msra.mxu0 0.0
    %104 = vmatprep.subr.mxu0 0.0
    %105 = vmatpush1.xpose.msra.mxu0 0.0
    %106 = vmatprep.subr.mxu0 0.0
    %107 = vmatpush1.xpose.msra.mxu0 0.0
    %108 = vmatprep.subr.mxu0 0.0
    %109 = vmatpush1.xpose.msra.mxu0 0.0
    %110 = vmatprep.subr.mxu0 0.0
    %111 = vmatpush1.xpose.msra.mxu0 0.0
    %112 = vmatprep.subr.mxu0 0.0
    %113 = vmatpush1.xpose.msra.mxu0 %v80
    %114 = vmatprep.subr.mxu0 0.0
    %115 = vmatpush2.xpose.msra.mxu0 0.0
    %116 = vmatprep.subr.mxu0 0.0
    %117 = vmatpush2.xpose.msra.mxu0 0.0
    %118 = vmatprep.subr.mxu0 0.0
    %119 = vmatpush2.xpose.msra.mxu0 0.0
    %120 = vmatprep.subr.mxu0 0.0
    %121 = vmatpush2.xpose.msra.mxu0 0.0
    %122 = vmatprep.subr.mxu0 0.0
    %123 = vmatpush2.xpose.msra.mxu0 0.0
    %124 = vmatprep.subr.mxu0 0.0
    %125 = vmatpush2.xpose.msra.mxu0 0.0
    %126 = vmatprep.subr.mxu0 0.0
    %127 = vmatpush2.xpose.msra.mxu0 0.0
    %128 = vmatprep.subr.mxu0 0.0
    %129 = vmatpush2.xpose.msra.mxu0 0.0
    %130 = vmatprep.subr.mxu0 0.0
    %131 = vmatpush2.xpose.msra.mxu0 0.0
    %132 = vmatprep.subr.mxu0 0.0
    %133 = vmatpush2.xpose.msra.mxu0 0.0
    %134 = vmatprep.subr.mxu0 0.0
    %135 = vmatpush2.xpose.msra.mxu0 0.0
    %136 = vmatprep.subr.mxu0 0.0
    %137 = vmatpush2.xpose.msra.mxu0 0.0
    %138 = vmatprep.subr.mxu0 0.0
    %139 = vmatpush2.xpose.msra.mxu0 0.0
    %140 = vmatprep.subr.mxu0 0.0
    %141 = vmatpush2.xpose.msra.mxu0 0.0
    %142 = vmatprep.subr.mxu0 0.0
    %143 = vmatpush2.xpose.msra.mxu0 0.0
    %144 = vmatprep.subr.mxu0 0.0
    %145 = vmatpush2.xpose.msra.mxu0 0.0
    %146 = vmatprep.mubr.f32.mxu0 0.0
    %147 = vmatmul.mubr.f32.gmra.mxu0 %v80
    %v148 = vpop.f32.mrf.mxu0
    %v149 = vadd.f32 0.0, %v148
    %v150 = vpop.f32.mrf.mxu0
    %151 = vdwg.mxu0
    %v153 = vsel %vm52, %v78, 0
    %155 = vmatprep.subr.mxu0 0.0
    %156 = vmatpush1.xpose.msra.mxu0 0.0
    %157 = vmatprep.subr.mxu0 0.0
    %158 = vmatpush1.xpose.msra.mxu0 0.0
    %159 = vmatprep.subr.mxu0 0.0
    %160 = vmatpush1.xpose.msra.mxu0 0.0
    %161 = vmatprep.subr.mxu0 0.0
    %162 = vmatpush1.xpose.msra.mxu0 0.0
    %163 = vmatprep.subr.mxu0 0.0
    %164 = vmatpush1.xpose.msra.mxu0 0.0
    %165 = vmatprep.subr.mxu0 0.0
    %166 = vmatpush1.xpose.msra.mxu0 0.0
    %167 = vmatprep.subr.mxu0 0.0
    %168 = vmatpush1.xpose.msra.mxu0 0.0
    %169 = vmatprep.subr.mxu0 0.0
    %170 = vmatpush1.xpose.msra.mxu0 0.0
    %171 = vmatprep.subr.mxu0 0.0
    %172 = vmatpush1.xpose.msra.mxu0 0.0
    %173 = vmatprep.subr.mxu0 0.0
    %174 = vmatpush1.xpose.msra.mxu0 0.0
    %175 = vmatprep.subr.mxu0 0.0
    %176 = vmatpush1.xpose.msra.mxu0 0.0
    %177 = vmatprep.subr.mxu0 0.0
    %178 = vmatpush1.xpose.msra.mxu0 0.0
    %179 = vmatprep.subr.mxu0 0.0
    %180 = vmatpush1.xpose.msra.mxu0 0.0
    %181 = vmatprep.subr.mxu0 0.0
    %182 = vmatpush1.xpose.msra.mxu0 0.0
    %183 = vmatprep.subr.mxu0 0.0
    %184 = vmatpush1.xpose.msra.mxu0 0.0
    %185 = vmatprep.subr.mxu0 0.0
    %186 = vmatpush1.xpose.msra.mxu0 %v153
    %187 = vmatprep.subr.mxu0 0.0
    %188 = vmatpush2.xpose.msra.mxu0 0.0
    %189 = vmatprep.subr.mxu0 0.0
    %190 = vmatpush2.xpose.msra.mxu0 0.0
    %191 = vmatprep.subr.mxu0 0.0
    %192 = vmatpush2.xpose.msra.mxu0 0.0
    %193 = vmatprep.subr.mxu0 0.0
    %194 = vmatpush2.xpose.msra.mxu0 0.0
    %195 = vmatprep.subr.mxu0 0.0
    %196 = vmatpush2.xpose.msra.mxu0 0.0
    %197 = vmatprep.subr.mxu0 0.0
    %198 = vmatpush2.xpose.msra.mxu0 0.0
    %199 = vmatprep.subr.mxu0 0.0
    %200 = vmatpush2.xpose.msra.mxu0 0.0
    %201 = vmatprep.subr.mxu0 0.0
    %202 = vmatpush2.xpose.msra.mxu0 0.0
    %203 = vmatprep.subr.mxu0 0.0
    %204 = vmatpush2.xpose.msra.mxu0 0.0
    %205 = vmatprep.subr.mxu0 0.0
    %206 = vmatpush2.xpose.msra.mxu0 0.0
    %207 = vmatprep.subr.mxu0 0.0
    %208 = vmatpush2.xpose.msra.mxu0 0.0
    %209 = vmatprep.subr.mxu0 0.0
    %210 = vmatpush2.xpose.msra.mxu0 0.0
    %211 = vmatprep.subr.mxu0 0.0
    %212 = vmatpush2.xpose.msra.mxu0 0.0
    %213 = vmatprep.subr.mxu0 0.0
    %214 = vmatpush2.xpose.msra.mxu0 0.0
    %215 = vmatprep.subr.mxu0 0.0
    %216 = vmatpush2.xpose.msra.mxu0 0.0
    %217 = vmatprep.subr.mxu0 0.0
    %218 = vmatpush2.xpose.msra.mxu0 0.0
    %219 = vmatprep.mubr.f32.mxu0 0.0
    %220 = vmatmul.mubr.f32.gmra.mxu0 %v153
    %v221 = vpop.f32.mrf.mxu0
    %v222 = vadd.f32 0.0, %v221
    %v223 = vpop.f32.mrf.mxu0
    %224 = vdwg.mxu0
    %v225 = vmul.f32 %v149, 1.442695
    %v226 = vpow.pop %v225
    %v227 = vmul.f32 %v222, 1.442695
    %v228 = vpow.pop %v227
    %vm229 = vcmask 64512
    %v230 = vsel %vm229, %v226, 0.0
    %231 = vadd.xlane.f32.xlu0 %v230
    %v232 = vpop.xlane.xlu0 %231
    %v233 = vsel %vm229, %v228, 0.0
    %234 = vadd.xlane.f32.xlu0 %v233
    %v235 = vpop.xlane.xlu0 %234
    %v236 = vrcp.pop %v232
    %v237 = vmul.f32 %v226, %v236
    %v238 = vrcp.pop %v235
    %v239 = vmul.f32 %v228, %v238
    %v241 = vsel %vm52, %v43, 0
    %v244 = vsel %vm52, %v44, 0
    %246 = vmatprep.subr.mxu0 0.0
    %247 = vmatpush1.msra.mxu0 0.0
    %248 = vmatprep.subr.mxu0 0.0
    %249 = vmatpush1.msra.mxu0 0.0
    %250 = vmatprep.subr.mxu0 0.0
    %251 = vmatpush1.msra.mxu0 0.0
    %252 = vmatprep.subr.mxu0 0.0
    %253 = vmatpush1.msra.mxu0 0.0
    %254 = vmatprep.subr.mxu0 0.0
    %255 = vmatpush1.msra.mxu0 0.0
    %256 = vmatprep.subr.mxu0 0.0
    %257 = vmatpush1.msra.mxu0 0.0
    %258 = vmatprep.subr.mxu0 0.0
    %259 = vmatpush1.msra.mxu0 0.0
    %260 = vmatprep.subr.mxu0 0.0
    %261 = vmatpush1.msra.mxu0 0.0
    %262 = vmatprep.subr.mxu0 0.0
    %263 = vmatpush1.msra.mxu0 0.0
    %264 = vmatprep.subr.mxu0 0.0
    %265 = vmatpush1.msra.mxu0 0.0
    %266 = vmatprep.subr.mxu0 0.0
    %267 = vmatpush1.msra.mxu0 0.0
    %268 = vmatprep.subr.mxu0 0.0
    %269 = vmatpush1.msra.mxu0 0.0
    %270 = vmatprep.subr.mxu0 0.0
    %271 = vmatpush1.msra.mxu0 %v48
    %272 = vmatprep.subr.mxu0 0.0
    %273 = vmatpush1.msra.mxu0 %v47
    %274 = vmatprep.subr.mxu0 0.0
    %275 = vmatpush1.msra.mxu0 %v46
    %276 = vmatprep.subr.mxu0 0.0
    %277 = vmatpush1.msra.mxu0 %v45
    %278 = vmatprep.subr.mxu0 0.0
    %279 = vmatpush2.msra.mxu0 0.0
    %280 = vmatprep.subr.mxu0 0.0
    %281 = vmatpush2.msra.mxu0 0.0
    %282 = vmatprep.subr.mxu0 0.0
    %283 = vmatpush2.msra.mxu0 0.0
    %284 = vmatprep.subr.mxu0 0.0
    %285 = vmatpush2.msra.mxu0 0.0
    %286 = vmatprep.subr.mxu0 0.0
    %287 = vmatpush2.msra.mxu0 0.0
    %288 = vmatprep.subr.mxu0 0.0
    %289 = vmatpush2.msra.mxu0 0.0
    %290 = vmatprep.subr.mxu0 0.0
    %291 = vmatpush2.msra.mxu0 0.0
    %292 = vmatprep.subr.mxu0 0.0
    %293 = vmatpush2.msra.mxu0 0.0
    %294 = vmatprep.subr.mxu0 0.0
    %295 = vmatpush2.msra.mxu0 0.0
    %296 = vmatprep.subr.mxu0 0.0
    %297 = vmatpush2.msra.mxu0 0.0
    %298 = vmatprep.subr.mxu0 0.0
    %299 = vmatpush2.msra.mxu0 0.0
    %300 = vmatprep.subr.mxu0 0.0
    %301 = vmatpush2.msra.mxu0 0.0
    %302 = vmatprep.subr.mxu0 0.0
    %303 = vmatpush2.msra.mxu0 0.0
    %304 = vmatprep.subr.mxu0 0.0
    %305 = vmatpush2.msra.mxu0 0.0
    %306 = vmatprep.subr.mxu0 0.0
    %307 = vmatpush2.msra.mxu0 0.0
    %308 = vmatprep.subr.mxu0 0.0
    %309 = vmatpush2.msra.mxu0 0.0
    %310 = vmatprep.mubr.f32.mxu0 0.0
    %311 = vmatmul.mubr.f32.gmra.mxu0 %v241
    %v312 = vpop.f32.mrf.mxu0
    %v313 = vadd.f32 0.0, %v312
    %v314 = vpop.f32.mrf.mxu0
    %315 = vmatprep.mubr.f32.mxu0 0.0
    %316 = vmatmul.mubr.f32.gmra.mxu0 %v244
    %v317 = vpop.f32.mrf.mxu0
    %v318 = vadd.f32 0.0, %v317
    %v319 = vpop.f32.mrf.mxu0
    %320 = vdwg.mxu0
    %v322 = vlaneseq
    %v323 = vshrl.u32 %v322, 7
    %v324 = vsub.s32 0, %v323
    %v325 = vrot.slane %v49, %v324
    %v328 = vsel %vm229, %v237, 0
    %330 = vmatprep.subr.mxu0 0.0
    %331 = vmatpush1.msra.mxu0 0.0
    %332 = vmatprep.subr.mxu0 0.0
    %333 = vmatpush1.msra.mxu0 0.0
    %334 = vmatprep.subr.mxu0 0.0
    %335 = vmatpush1.msra.mxu0 0.0
    %336 = vmatprep.subr.mxu0 0.0
    %337 = vmatpush1.msra.mxu0 0.0
    %338 = vmatprep.subr.mxu0 0.0
    %339 = vmatpush1.msra.mxu0 0.0
    %340 = vmatprep.subr.mxu0 0.0
    %341 = vmatpush1.msra.mxu0 0.0
    %342 = vmatprep.subr.mxu0 0.0
    %343 = vmatpush1.msra.mxu0 0.0
    %344 = vmatprep.subr.mxu0 0.0
    %345 = vmatpush1.msra.mxu0 0.0
    %346 = vmatprep.subr.mxu0 0.0
    %347 = vmatpush1.msra.mxu0 0.0
    %348 = vmatprep.subr.mxu0 0.0
    %349 = vmatpush1.msra.mxu0 0.0
    %350 = vmatprep.subr.mxu0 0.0
    %351 = vmatpush1.msra.mxu0 0.0
    %352 = vmatprep.subr.mxu0 0.0
    %353 = vmatpush1.msra.mxu0 0.0
    %354 = vmatprep.subr.mxu0 0.0
    %355 = vmatpush1.msra.mxu0 0.0
    %356 = vmatprep.subr.mxu0 0.0
    %357 = vmatpush1.msra.mxu0 0.0
    %358 = vmatprep.subr.mxu0 0.0
    %359 = vmatpush1.msra.mxu0 0.0
    %360 = vmatprep.subr.mxu0 0.0
    %361 = vmatpush1.msra.mxu0 %v313
    %362 = vmatprep.subr.mxu0 0.0
    %363 = vmatpush2.msra.mxu0 0.0
    %364 = vmatprep.subr.mxu0 0.0
    %365 = vmatpush2.msra.mxu0 0.0
    %366 = vmatprep.subr.mxu0 0.0
    %367 = vmatpush2.msra.mxu0 0.0
    %368 = vmatprep.subr.mxu0 0.0
    %369 = vmatpush2.msra.mxu0 0.0
    %370 = vmatprep.subr.mxu0 0.0
    %371 = vmatpush2.msra.mxu0 0.0
    %372 = vmatprep.subr.mxu0 0.0
    %373 = vmatpush2.msra.mxu0 0.0
    %374 = vmatprep.subr.mxu0 0.0
    %375 = vmatpush2.msra.mxu0 0.0
    %376 = vmatprep.subr.mxu0 0.0
    %377 = vmatpush2.msra.mxu0 0.0
    %378 = vmatprep.subr.mxu0 0.0
    %379 = vmatpush2.msra.mxu0 0.0
    %380 = vmatprep.subr.mxu0 0.0
    %381 = vmatpush2.msra.mxu0 0.0
    %382 = vmatprep.subr.mxu0 0.0
    %383 = vmatpush2.msra.mxu0 0.0
    %384 = vmatprep.subr.mxu0 0.0
    %385 = vmatpush2.msra.mxu0 0.0
    %386 = vmatprep.subr.mxu0 0.0
    %387 = vmatpush2.msra.mxu0 0.0
    %388 = vmatprep.subr.mxu0 0.0
    %389 = vmatpush2.msra.mxu0 0.0
    %390 = vmatprep.subr.mxu0 0.0
    %391 = vmatpush2.msra.mxu0 0.0
    %392 = vmatprep.subr.mxu0 0.0
    %393 = vmatpush2.msra.mxu0 0.0
    %394 = vmatprep.mubr.f32.mxu0 0.0
    %395 = vmatmul.mubr.f32.gmra.mxu0 %v328
    %v396 = vpop.f32.mrf.mxu0
    %v397 = vadd.f32 %v325, %v396
    %v398 = vpop.f32.mrf.mxu0
    %399 = vdwg.mxu0
    %v401 = vsel %vm229, %v239, 0
    %403 = vmatprep.subr.mxu0 0.0
    %404 = vmatpush1.msra.mxu0 0.0
    %405 = vmatprep.subr.mxu0 0.0
    %406 = vmatpush1.msra.mxu0 0.0
    %407 = vmatprep.subr.mxu0 0.0
    %408 = vmatpush1.msra.mxu0 0.0
    %409 = vmatprep.subr.mxu0 0.0
    %410 = vmatpush1.msra.mxu0 0.0
    %411 = vmatprep.subr.mxu0 0.0
    %412 = vmatpush1.msra.mxu0 0.0
    %413 = vmatprep.subr.mxu0 0.0
    %414 = vmatpush1.msra.mxu0 0.0
    %415 = vmatprep.subr.mxu0 0.0
    %416 = vmatpush1.msra.mxu0 0.0
    %417 = vmatprep.subr.mxu0 0.0
    %418 = vmatpush1.msra.mxu0 0.0
    %419 = vmatprep.subr.mxu0 0.0
    %420 = vmatpush1.msra.mxu0 0.0
    %421 = vmatprep.subr.mxu0 0.0
    %422 = vmatpush1.msra.mxu0 0.0
    %423 = vmatprep.subr.mxu0 0.0
    %424 = vmatpush1.msra.mxu0 0.0
    %425 = vmatprep.subr.mxu0 0.0
    %426 = vmatpush1.msra.mxu0 0.0
    %427 = vmatprep.subr.mxu0 0.0
    %428 = vmatpush1.msra.mxu0 0.0
    %429 = vmatprep.subr.mxu0 0.0
    %430 = vmatpush1.msra.mxu0 0.0
    %431 = vmatprep.subr.mxu0 0.0
    %432 = vmatpush1.msra.mxu0 0.0
    %433 = vmatprep.subr.mxu0 0.0
    %434 = vmatpush1.msra.mxu0 %v318
    %435 = vmatprep.subr.mxu0 0.0
    %436 = vmatpush2.msra.mxu0 0.0
    %437 = vmatprep.subr.mxu0 0.0
    %438 = vmatpush2.msra.mxu0 0.0
    %439 = vmatprep.subr.mxu0 0.0
    %440 = vmatpush2.msra.mxu0 0.0
    %441 = vmatprep.subr.mxu0 0.0
    %442 = vmatpush2.msra.mxu0 0.0
    %443 = vmatprep.subr.mxu0 0.0
    %444 = vmatpush2.msra.mxu0 0.0
    %445 = vmatprep.subr.mxu0 0.0
    %446 = vmatpush2.msra.mxu0 0.0
    %447 = vmatprep.subr.mxu0 0.0
    %448 = vmatpush2.msra.mxu0 0.0
    %449 = vmatprep.subr.mxu0 0.0
    %450 = vmatpush2.msra.mxu0 0.0
    %451 = vmatprep.subr.mxu0 0.0
    %452 = vmatpush2.msra.mxu0 0.0
    %453 = vmatprep.subr.mxu0 0.0
    %454 = vmatpush2.msra.mxu0 0.0
    %455 = vmatprep.subr.mxu0 0.0
    %456 = vmatpush2.msra.mxu0 0.0
    %457 = vmatprep.subr.mxu0 0.0
    %458 = vmatpush2.msra.mxu0 0.0
    %459 = vmatprep.subr.mxu0 0.0
    %460 = vmatpush2.msra.mxu0 0.0
    %461 = vmatprep.subr.mxu0 0.0
    %462 = vmatpush2.msra.mxu0 0.0
    %463 = vmatprep.subr.mxu0 0.0
    %464 = vmatpush2.msra.mxu0 0.0
    %465 = vmatprep.subr.mxu0 0.0
    %466 = vmatpush2.msra.mxu0 0.0
    %467 = vmatprep.mubr.f32.mxu0 0.0
    %468 = vmatmul.mubr.f32.gmra.mxu0 %v401
    %v469 = vpop.f32.mrf.mxu0
    %v470 = vadd.f32 %v325, %v469
    %v471 = vpop.f32.mrf.mxu0
    %472 = vdwg.mxu0
    %v473 = vadd.f32 %v397, %v43
    %v474 = vadd.f32 %v470, %v44
    %475 = vst.msk [vmem:[#allocation7] sm:$0xff] %vm52, %v473
    %476 = vst.msk [vmem:[#allocation7 + $0x8] sm:$0xff] %vm52, %v474
    // Predicated region
    $region22: #{tpu_custom_call.1} parent=1 // pred_check
      _
    $region23: #{tpu_custom_call.1} parent=1 // pred_check_branch
      %478 = sbr.rel (0) target = $region25
    $region24: #{tpu_custom_call.1} parent=1 // pred_region
      %s480 = ssub.s32 256, 256
      %481 = vsyncadd [#allocation4], %s480
      %s482 = sshll.u32 [#allocation7], 4
      %s483 = int_to_ptr.vmem [resolvable:$true] %s482
      %488 = dma.vmem_to_hbm [thread:$0]  %s483, 256, %s3, [#allocation4], 128, 128, 8
    $region25: #{tpu_custom_call.1} parent=1 // pred_fallthru
      _
    // Predicated region
    $region26: #{tpu_custom_call.1} parent=1 // pred_check
      _
    $region27: #{tpu_custom_call.1} parent=1 // pred_check_branch
      %490 = sbr.rel (0) target = $region29
    $region28: #{tpu_custom_call.1} parent=1 // pred_region
      %491 = dma.done [#allocation4], 256
    $region29: #{tpu_custom_call.1} parent=1 // pred_fallthru
      _
    %492 = vsyncpa [#allocation3], 1
    %493 = vsyncpa [#allocation6], 1
    %494 = vsyncpa [#allocation4], 1

</llo_original>
